<compile_context>
chip_gen: v7x
topology: tpu7x:2x2x1
jax: 0.10.0
libtpu: 0.0.40
codegen_flags: <defaults>
</compile_context>

<pallas_src>
import numpy as np
import jax
import jax.numpy as jnp
from jax.experimental import pallas as pl
from jax.experimental.pallas import tpu as pltpu


def _drop_path_kernel(x_ref, m_ref, o_ref):
    # x_ref: (TILE_B, TILE_D) input tile, m_ref: (TILE_B, 1) f32 per-sample
    # keep-mask (already scaled by 1/keep_prob when requested).
    x = x_ref[...]
    m = m_ref[...]  # f32
    o_ref[...] = (x.astype(jnp.float32) * m).astype(o_ref.dtype)


def _pick_tile_d(feat: int) -> int:
    # Lane-dense tiles: multiple of 128, capped at 16384 lanes so an
    # (8, TILE_D) f32 block is <= 512 KiB (x2 in/out x2 double-buffer ~ 2 MiB,
    # comfortably inside v5e's 16 MiB default scoped VMEM).
    cap = 16384
    if feat % 128 == 0:
        return min(feat, cap)
    # Not a multiple of 128: use the full extent (allowed by the (8,128) rule
    # when the block equals the full array dim) -> no padding copy needed.
    return feat


def drop_path_pallas(x, key, *, drop_prob=0.0, training=False, scale_by_keep=True):
    """Pallas equivalent of `drop_path(x, drop_prob, training, scale_by_keep)`."""
    if drop_prob == 0.0 or not training:
        return x
    keep_prob = 1.0 - drop_prob

    B = x.shape[0]
    feat = int(np.prod(x.shape[1:])) if x.ndim > 1 else 1

    # Per-sample keep mask, drawn once with the (well-mixed) JAX PRNG.
    keep = jax.random.bernoulli(key, p=keep_prob, shape=(B,)).astype(jnp.float32)
    scale = (1.0 / keep_prob) if (scale_by_keep and keep_prob > 0.0) else 1.0
    mask = (keep * jnp.float32(scale)).reshape(B, 1)

    x2 = x.reshape(B, feat)

    TILE_B = B if B < 8 else 8
    TILE_D = _pick_tile_d(feat)
    grid = (pl.cdiv(B, TILE_B), pl.cdiv(feat, TILE_D))

    out = pl.pallas_call(
        _drop_path_kernel,
        out_shape=jax.ShapeDtypeStruct((B, feat), x.dtype),
        grid=grid,
        in_specs=[
            pl.BlockSpec((TILE_B, TILE_D), lambda i, j: (i, j)),
            pl.BlockSpec((TILE_B, 1), lambda i, j: (i, 0)),
        ],
        out_specs=pl.BlockSpec((TILE_B, TILE_D), lambda i, j: (i, j)),
        compiler_params=pltpu.CompilerParams(
            # Iterations are fully independent (mask precomputed), so both grid
            # axes can be sharded across TensorCores on v7x.
            dimension_semantics=("parallel", "parallel"),
        ),
    )(x2, mask)

    return out.reshape(x.shape)


class DropPath:
    """Mirror of the PyTorch DropPath module (no parameters)."""

    def __init__(self, drop_prob: float = 0.0, scale_by_keep: bool = True):
        self.drop_prob = drop_prob
        self.scale_by_keep = scale_by_keep
        self.training = True

    def __call__(self, x, seed=0):
        key = jax.random.PRNGKey(seed)
        return drop_path_pallas(
            x,
            key,
            drop_prob=self.drop_prob,
            training=self.training,
            scale_by_keep=self.scale_by_keep,
        )


# TODO(synk): the optional "skip HBM read of dropped samples" optimization
# (pl.ANY input + pl.when-gated manual DMA) is omitted; for typical drop_prob
# it saves ~drop_prob/2 of traffic but adds manual-DMA complexity.

if __name__ == "__main__":
    key = jax.random.PRNGKey(0)
    x = jax.random.normal(key, (2, 4, 16, 16), dtype=jnp.float32)  # NCHW

    mod = DropPath(drop_prob=0.3, scale_by_keep=True)
    mod.training = True

    y = jax.block_until_ready(mod(x, seed=42))

    # Sanity: each sample is either all-zero or x / keep_prob.
    keep_prob = 1.0 - mod.drop_prob
    xn = np.asarray(x)
    yn = np.asarray(y)
    for b in range(xn.shape[0]):
        kept = np.allclose(yn[b], xn[b] / keep_prob, rtol=1e-5, atol=1e-5)
        dropped = np.allclose(yn[b], 0.0)
        assert kept or dropped, f"sample {b}: not a valid drop-path output"

    # Feature extent that is NOT a multiple of 128 (full-extent block path).
    x_odd = jax.random.normal(jax.random.PRNGKey(1), (2, 3, 5, 7), dtype=jnp.float32)
    y_odd = jax.block_until_ready(mod(x_odd, seed=7))
    xon = np.asarray(x_odd)
    yon = np.asarray(y_odd)
    for b in range(xon.shape[0]):
        kept = np.allclose(yon[b], xon[b] / keep_prob, rtol=1e-5, atol=1e-5)
        dropped = np.allclose(yon[b], 0.0)
        assert kept or dropped, f"odd-shape sample {b}: not a valid drop-path output"

    # Eval mode / drop_prob=0 -> identity.
    mod.training = False
    y_eval = jax.block_until_ready(mod(x, seed=42))
    assert np.allclose(np.asarray(y_eval), xn)

    print("KERNEL_OK")
</pallas_src>

<mosaic_0001>
module attributes {stable_mosaic.version = 11 : i64} {
  func.func @_drop_path_kernel(%arg0: i32, %arg1: i32, %arg2: memref<2x1024xf32, #tpu.memory_space<vmem>>, %arg3: memref<2x1xf32, #tpu.memory_space<vmem>>, %arg4: memref<2x1024xf32, #tpu.memory_space<vmem>>) attributes {dimension_semantics = [#tpu.dimension_semantics<parallel>, #tpu.dimension_semantics<parallel>], iteration_bounds = array<i64: 1, 1>, scalar_prefetch = 0 : i64, scratch_operands = 0 : i64, tpu.core_type = #tpu.core_type<tc>, window_params = [{transform_indices = @transform_0, window_bounds = array<i64: 2, 1024>}, {transform_indices = @transform_1, window_bounds = array<i64: 2, 1>}, {transform_indices = @transform_2, window_bounds = array<i64: 2, 1024>}]} {
    %c0 = arith.constant 0 : index
    %c0_0 = arith.constant 0 : index
    %0 = vector.load %arg2[%c0, %c0_0] : memref<2x1024xf32, #tpu.memory_space<vmem>>, vector<2x1024xf32>
    %c0_1 = arith.constant 0 : index
    %c0_2 = arith.constant 0 : index
    %1 = vector.load %arg3[%c0_1, %c0_2] : memref<2x1xf32, #tpu.memory_space<vmem>>, vector<2x1xf32>
    %2 = vector.broadcast %1 : vector<2x1xf32> to vector<2x1024xf32>
    %3 = arith.mulf %0, %2 : vector<2x1024xf32>
    %c0_3 = arith.constant 0 : index
    %c0_4 = arith.constant 0 : index
    %4 = vector.load %arg4[%c0_3, %c0_4] : memref<2x1024xf32, #tpu.memory_space<vmem>>, vector<2x1024xf32>
    tpu.vector_store %arg4[%c0_3, %c0_4], %3 {strides = array<i32>} : memref<2x1024xf32, #tpu.memory_space<vmem>>, vector<2x1024xf32>,
    return
  }
  func.func @transform_0(%arg0: i32, %arg1: i32) -> (i32, i32) {
    %c0_i32 = arith.constant 0 : i32
    return %arg0, %arg1 : i32, i32
  }
  func.func @transform_1(%arg0: i32, %arg1: i32) -> (i32, i32) {
    %c0_i32 = arith.constant 0 : i32
    %c0_i32_0 = arith.constant 0 : i32
    return %arg0, %c0_i32 : i32, i32
  }
  func.func @transform_2(%arg0: i32, %arg1: i32) -> (i32, i32) {
    %c0_i32 = arith.constant 0 : i32
    return %arg0, %arg1 : i32, i32
  }
}

</mosaic_0001>

<llo_original>
// kernel: tpu_custom_call.1
$region0: #{tpu_custom_call.1}
  #allocation0 [shape = 'u32[]', space=smem, size = 0x4, offset = 0x4, fixed_abs, tag = 'smem constant byte address 0x4 - core index']
  #allocation1 [shape = 'u32[144,128]{1,0:T(1,128)}', space=vmem, size = 0x12000, scoped, tag = 'internal scratch']
  %s0 = inlined_call_operand.hbm [shape: f32[2,1024], index: 0, kind: input, shape index: {}]
  %s1 = inlined_call_operand.vmem [shape: f32[2,1], index: 1, kind: input, shape index: {}]
  %s2 = inlined_call_operand.hbm [shape: f32[2,1024], index: 2, kind: output, shape index: {}]
  %s3 = sld [smem:[#allocation0]]
  $region22: #{tpu_custom_call.1} parent=0
    _
  %s5 = ssub.s32 1, %s3
  %s6 = scalar_select 0, %s5, %s3
  $region1: #{tpu_custom_call.1} parent=0
    #allocation2 [shape = 'u8[8192]{0}', space=vmem, size = 0x2000, scoped, tag = 'input window, operand 0, single buffered']
    #allocation3 [shape = 's32[1]{0}', space=sflag, size = 0x4, scoped, tag = 'scoped memory for tpu_custom_call.1']
    #allocation4 [shape = 's32[1]{0}', space=sflag, size = 0x4, scoped, tag = 'scoped memory for tpu_custom_call.1']
    #allocation5 [shape = 'u8[8192]{0}', space=vmem, size = 0x2000, scoped, tag = 'output window, operand 0, single buffered']
    %7 = vsyncpa [#allocation3], 0
    %8 = vsyncpa [#allocation4], 0
    // Predicated region
    $region2: #{tpu_custom_call.1} parent=1 // pred_check
      _
    $region3: #{tpu_custom_call.1} parent=1 // pred_check_branch
      %10 = sbr.rel (0) target = $region5
    $region4: #{tpu_custom_call.1} parent=1 // pred_region
      %s12 = ssub.s32 256, 256
      %13 = vsyncadd [#allocation3], %s12
      %s15 = sshll.u32 [#allocation2], 4
      %s16 = int_to_ptr.vmem [resolvable:$true] %s15
      %18 = dma.hbm_to_vmem [thread:$0]  %s0, 256, %s16, [#allocation3]
    $region5: #{tpu_custom_call.1} parent=1 // pred_fallthru
      _
    // Predicated region
    $region6: #{tpu_custom_call.1} parent=1 // pred_check
      _
    $region7: #{tpu_custom_call.1} parent=1 // pred_check_branch
      %20 = sbr.rel (0) target = $region9
    $region8: #{tpu_custom_call.1} parent=1 // pred_region
      _
    $region9: #{tpu_custom_call.1} parent=1 // pred_fallthru
      _
    // Predicated region
    $region10: #{tpu_custom_call.1} parent=1 // pred_check
      _
    $region11: #{tpu_custom_call.1} parent=1 // pred_check_branch
      %22 = sbr.rel (0) target = $region13
    $region12: #{tpu_custom_call.1} parent=1 // pred_region
      %23 = dma.done [#allocation3], 256
    $region13: #{tpu_custom_call.1} parent=1 // pred_fallthru
      _
    %v24 = vld [vmem:[#allocation2] sm:$0xff]
    %v25 = vld [vmem:[#allocation2 + $0x8] sm:$0xff]
    %v26 = vld [vmem:[%s1] sm:$0x3]
    %28 = vset.pattern.permute.xlu0 0
    %29 = vperm.xlu0 %28, %v26
    %v30 = vpop.permute.xlu0 %29
    %v32 = vunpack.c.l.s4 269488144
    %v33 = vunpack.c.0.s8 %v32
    %v34 = vlaneseq
    %v35 = vshrl.u32 %v34, 7
    %v36 = vsub.s32 %v33, %v35
    %v37 = vrot.slane %v30, %v36
    %v39 = vmul.f32 %v24, %v37
    %v40 = vmul.f32 %v25, %v37
    %41 = vst [vmem:[#allocation5] sm:$0xff] %v39
    %42 = vst [vmem:[#allocation5 + $0x8] sm:$0xff] %v40
    // Predicated region
    $region14: #{tpu_custom_call.1} parent=1 // pred_check
      _
    $region15: #{tpu_custom_call.1} parent=1 // pred_check_branch
      %44 = sbr.rel (0) target = $region17
    $region16: #{tpu_custom_call.1} parent=1 // pred_region
      %s46 = ssub.s32 256, 256
      %47 = vsyncadd [#allocation4], %s46
      %s49 = sshll.u32 [#allocation5], 4
      %s50 = int_to_ptr.vmem [resolvable:$true] %s49
      %52 = dma.vmem_to_hbm [thread:$0]  %s50, 256, %s2, [#allocation4]
    $region17: #{tpu_custom_call.1} parent=1 // pred_fallthru
      _
    // Predicated region
    $region18: #{tpu_custom_call.1} parent=1 // pred_check
      _
    $region19: #{tpu_custom_call.1} parent=1 // pred_check_branch
      %54 = sbr.rel (0) target = $region21
    $region20: #{tpu_custom_call.1} parent=1 // pred_region
      %55 = dma.done [#allocation4], 256
    $region21: #{tpu_custom_call.1} parent=1 // pred_fallthru
      _
    %56 = vsyncpa [#allocation3], 1
    %57 = vsyncpa [#allocation4], 1

</llo_original>
